<compile_context>
chip_gen: v7x
topology: tpu7x:2x2x1
jax: 0.10.0
libtpu: 0.0.40
codegen_flags: <defaults>
</compile_context>

<pallas_src>
import jax
import jax.numpy as jnp
from jax.experimental import pallas as pl
from jax.experimental.pallas import tpu as pltpu

_LANES = 128
_SUBLANES = 8
# ~4 MiB per buffer: double-buffered input + output = 4 live buffers ~= 16 MiB.
_BLOCK_BYTES_CAP = 4 * 1024 * 1024
# Raise the scoped-VMEM limit (v5e default is 16 MiB, v6e/v7x 32 MiB); still
# well under v7x's 64 MiB physical VMEM.
_VMEM_LIMIT_BYTES = 48 * 1024 * 1024


def _copy_kernel(x_ref, o_ref):
    # Pure lane-dense copy of one (TR, 128) tile. No reshape / XLU work in VMEM.
    o_ref[...] = x_ref[...]


def _pick_rows_per_block(rows: int, itemsize: int) -> int:
    """Rows per block for the (rows, 128) view.

    Always a multiple of 8 (or the full extent when rows < 8), capped so one
    buffer stays <= _BLOCK_BYTES_CAP.  Prefers an exact divisor of `rows`
    (no masked edge block); otherwise the pl.cdiv grid masks the ragged tail.
    """
    cap = max(_SUBLANES,
              (_BLOCK_BYTES_CAP // (_LANES * itemsize)) // _SUBLANES * _SUBLANES)
    if rows <= _SUBLANES:
        return rows                              # full-extent block (always legal)
    if rows <= cap:
        # Whole array in one block if sublane-aligned, else round down to 8
        # and let the cdiv grid mask the final partial block.
        return rows if rows % _SUBLANES == 0 else (rows // _SUBLANES) * _SUBLANES
    # rows > cap: look for an exact divisor near the cap (bounded search);
    # never fall below cap//2 (avoids pathological tiny tiles for prime-ish rows).
    cand = cap
    floor = max(_SUBLANES, cap // 2)
    while cand >= floor:
        if rows % cand == 0:
            return cand
        cand -= _SUBLANES
    return cap                                   # masked edge block via pl.cdiv


def flatten(x: jax.Array) -> jax.Array:
    """Flatten [B, H, W, C] -> [B, H*W*C] (equivalent to torch x.view(B, -1))."""
    B = x.shape[0]
    flat = 1
    for d in x.shape[1:]:
        flat *= d
    out_shape = (B, flat)
    total = B * flat
    itemsize = jnp.dtype(x.dtype).itemsize

    if total == 0 or total % _LANES != 0:
        # No lane-dense tiling exists for a non-multiple-of-128 stream; take
        # the free metadata-only reshape path (exactly what .view does).
        # TODO(synk): pad-and-slice kernel path for non-128-multiple totals.
        return x.reshape(out_shape)

    # View the contiguous stream as (rows, 128): each (TR, 128) block is one
    # contiguous HBM segment -> maximum-efficiency DMA, unmasked full-vreg
    # loads/stores, independent of the batch boundary.
    rows = total // _LANES
    x2 = x.reshape(rows, _LANES)                 # metadata-only for contiguous x

    tr = _pick_rows_per_block(rows, itemsize)
    grid = (pl.cdiv(rows, tr),)

    out2 = pl.pallas_call(
        _copy_kernel,
        out_shape=jax.ShapeDtypeStruct((rows, _LANES), x.dtype),
        grid_spec=pltpu.PrefetchScalarGridSpec(
            num_scalar_prefetch=0,
            grid=grid,
            in_specs=[pl.BlockSpec((tr, _LANES), lambda i: (i, 0))],
            out_specs=pl.BlockSpec((tr, _LANES), lambda i: (i, 0)),
        ),
        compiler_params=pltpu.CompilerParams(
            # Independent contiguous copies per grid step.  (On v7x,
            # CORE_PARALLEL / core_map could shard the copy across both TCs,
            # but the copy is HBM-bound so the win is modest; keep the
            # portable setting here.)
            dimension_semantics=("parallel",),
            vmem_limit_bytes=_VMEM_LIMIT_BYTES,
        ),
        cost_estimate=pl.CostEstimate(
            flops=0, transcendentals=0, bytes_accessed=2 * total * itemsize),
    )(x2)

    # Metadata-only reshape back to the logical [B, H*W*C] output.
    return out2.reshape(out_shape)


if __name__ == "__main__":
    key = jax.random.PRNGKey(0)
    B, H, W, C = 2, 16, 16, 4
    x = jax.random.normal(key, (B, H, W, C), dtype=jnp.float32)

    out = flatten(x)
    jax.block_until_ready(out)

    # Reference: plain reshape (what torch's .view(B, -1) does on NHWC data).
    ref = x.reshape(B, H * W * C)
    assert out.shape == (B, H * W * C), out.shape
    assert out.dtype == x.dtype
    assert jnp.array_equal(out, ref), "Flatten kernel mismatch vs reference"

    print("KERNEL_OK")
</pallas_src>

<mosaic_0001>
module attributes {stable_mosaic.version = 11 : i64} {
  func.func @_copy_kernel(%arg0: i32, %arg1: memref<16x128xf32, #tpu.memory_space<vmem>>, %arg2: memref<16x128xf32, #tpu.memory_space<vmem>>) attributes {dimension_semantics = [#tpu.dimension_semantics<parallel>], iteration_bounds = array<i64: 1>, scalar_prefetch = 0 : i64, scratch_operands = 0 : i64, tpu.core_type = #tpu.core_type<tc>, window_params = [{transform_indices = @transform_0, window_bounds = array<i64: 16, 128>}, {transform_indices = @transform_1, window_bounds = array<i64: 16, 128>}]} {
    %c0 = arith.constant 0 : index
    %c0_0 = arith.constant 0 : index
    %0 = vector.load %arg1[%c0, %c0_0] : memref<16x128xf32, #tpu.memory_space<vmem>>, vector<16x128xf32>
    %c0_1 = arith.constant 0 : index
    %c0_2 = arith.constant 0 : index
    %1 = vector.load %arg2[%c0_1, %c0_2] : memref<16x128xf32, #tpu.memory_space<vmem>>, vector<16x128xf32>
    tpu.vector_store %arg2[%c0_1, %c0_2], %0 {strides = array<i32>} : memref<16x128xf32, #tpu.memory_space<vmem>>, vector<16x128xf32>,
    return
  }
  func.func @transform_0(%arg0: i32) -> (i32, i32) {
    %c0_i32 = arith.constant 0 : i32
    %c0_i32_0 = arith.constant 0 : i32
    return %arg0, %c0_i32 : i32, i32
  }
  func.func @transform_1(%arg0: i32) -> (i32, i32) {
    %c0_i32 = arith.constant 0 : i32
    %c0_i32_0 = arith.constant 0 : i32
    return %arg0, %c0_i32 : i32, i32
  }
}

</mosaic_0001>

<llo_original>
// kernel: tpu_custom_call.1
$region0: #{tpu_custom_call.1}
  #allocation0 [shape = 'u32[]', space=smem, size = 0x4, offset = 0x4, fixed_abs, tag = 'smem constant byte address 0x4 - core index']
  #allocation1 [shape = 'u32[144,128]{1,0:T(1,128)}', space=vmem, size = 0x12000, scoped, tag = 'internal scratch']
  %s0 = inlined_call_operand.hbm [shape: f32[16,128], index: 0, kind: input, shape index: {}]
  %s1 = inlined_call_operand.hbm [shape: f32[16,128], index: 1, kind: output, shape index: {}]
  %s2 = sld [smem:[#allocation0]]
  $region18: #{tpu_custom_call.1} parent=0
    _
  %s4 = ssub.s32 1, %s2
  %s5 = scalar_select 0, %s4, %s2
  $region1: #{tpu_custom_call.1} parent=0
    #allocation2 [shape = 'u8[8192]{0}', space=vmem, size = 0x2000, scoped, tag = 'input window, operand 0, single buffered']
    #allocation3 [shape = 's32[1]{0}', space=sflag, size = 0x4, scoped, tag = 'scoped memory for tpu_custom_call.1']
    #allocation4 [shape = 's32[1]{0}', space=sflag, size = 0x4, scoped, tag = 'scoped memory for tpu_custom_call.1']
    #allocation5 [shape = 'u8[8192]{0}', space=vmem, size = 0x2000, scoped, tag = 'output window, operand 0, single buffered']
    %6 = vsyncpa [#allocation3], 0
    %7 = vsyncpa [#allocation4], 0
    // Predicated region
    $region2: #{tpu_custom_call.1} parent=1 // pred_check
      _
    $region3: #{tpu_custom_call.1} parent=1 // pred_check_branch
      %9 = sbr.rel (0) target = $region5
    $region4: #{tpu_custom_call.1} parent=1 // pred_region
      %s11 = ssub.s32 256, 256
      %12 = vsyncadd [#allocation3], %s11
      %s13 = sshll.u32 [#allocation2], 4
      %s14 = int_to_ptr.vmem [resolvable:$true] %s13
      %19 = dma.hbm_to_vmem [thread:$0]  %s0, 256, %s14, [#allocation3], 128, 128, 8
    $region5: #{tpu_custom_call.1} parent=1 // pred_fallthru
      _
    // Predicated region
    $region6: #{tpu_custom_call.1} parent=1 // pred_check
      _
    $region7: #{tpu_custom_call.1} parent=1 // pred_check_branch
      %21 = sbr.rel (0) target = $region9
    $region8: #{tpu_custom_call.1} parent=1 // pred_region
      %22 = dma.done [#allocation3], 256
    $region9: #{tpu_custom_call.1} parent=1 // pred_fallthru
      _
    %v23 = vld [vmem:[#allocation2] sm:$0xff]
    %v24 = vld [vmem:[#allocation2 + $0x8] sm:$0xff]
    %25 = vst [vmem:[#allocation5] sm:$0xff] %v23
    %26 = vst [vmem:[#allocation5 + $0x8] sm:$0xff] %v24
    // Predicated region
    $region10: #{tpu_custom_call.1} parent=1 // pred_check
      _
    $region11: #{tpu_custom_call.1} parent=1 // pred_check_branch
      %28 = sbr.rel (0) target = $region13
    $region12: #{tpu_custom_call.1} parent=1 // pred_region
      %s30 = ssub.s32 256, 256
      %31 = vsyncadd [#allocation4], %s30
      %s32 = sshll.u32 [#allocation5], 4
      %s33 = int_to_ptr.vmem [resolvable:$true] %s32
      %38 = dma.vmem_to_hbm [thread:$0]  %s33, 256, %s1, [#allocation4], 128, 128, 8
    $region13: #{tpu_custom_call.1} parent=1 // pred_fallthru
      _
    // Predicated region
    $region14: #{tpu_custom_call.1} parent=1 // pred_check
      _
    $region15: #{tpu_custom_call.1} parent=1 // pred_check_branch
      %40 = sbr.rel (0) target = $region17
    $region16: #{tpu_custom_call.1} parent=1 // pred_region
      %41 = dma.done [#allocation4], 256
    $region17: #{tpu_custom_call.1} parent=1 // pred_fallthru
      _
    %42 = vsyncpa [#allocation3], 1
    %43 = vsyncpa [#allocation4], 1

</llo_original>
